<compile_context>
chip_gen: v7x
topology: tpu7x:2x2x1
jax: 0.10.0
libtpu: 0.0.40
codegen_flags: <defaults>
</compile_context>

<pallas_src>
import jax
import jax.numpy as jnp
from jax.experimental import pallas as pl
from jax.experimental.pallas import tpu as pltpu

_HIDDEN = 32
_LANE = 128  # hidden dim is zero-padded to one full vreg lane width once, at prep time.


def _mlp_kernel(x_ref, w1_ref, b1_ref, w2_ref, b2_ref, o_ref):
    """One batch tile: relu(x @ W1 + b1) @ W2 + b2 -> sigmoid - 0.4."""
    # MXU matmul, f32 accumulation.  Weights arrive pre-transposed/padded, so
    # there is no transpose/reshape on the hot path.
    h = jnp.dot(x_ref[...], w1_ref[...], preferred_element_type=jnp.float32)
    h = jnp.maximum(h + b1_ref[...], 0.0)                     # (tb, 128) f32 VPU
    # Second matmul contracts K=128 (zero-padded hidden) into the *narrow*
    # real output width -> the epilogue and the store touch only out_size lanes.
    logits = jnp.dot(h.astype(w2_ref.dtype), w2_ref[...],
                     preferred_element_type=jnp.float32)
    logits = logits + b2_ref[...]                             # (tb, out_size) f32
    # sigmoid via exp (EUP) + reciprocal; exact reciprocal to keep 1e-5 accuracy.
    sig = pl.reciprocal(1.0 + jnp.exp(-logits))
    o_ref[...] = (sig - 0.4).astype(o_ref.dtype)              # narrow store, no padding


def prepare_params(w1, b1, w2, b2, *, param_dtype=jnp.float32):
    """One-time layout prep of PyTorch nn.Linear parameters.

    PyTorch layout:  w1: (32, in), b1: (32,), w2: (out, 32), b2: (out,)
    Returns: W1 (in, 128), b1 (1, 128), W2 (128, out), b2 (1, out).
    The hidden dim is zero-padded to 128 lanes (exact math: padded columns of h
    are relu(0+0)=0 and hit zero rows of W2).  The output dim is NOT padded.
    """
    in_size = w1.shape[1]
    out_size = w2.shape[0]

    w1_t = jnp.zeros((in_size, _LANE), param_dtype).at[:, :_HIDDEN].set(
        jnp.asarray(w1, param_dtype).T)
    b1_r = jnp.zeros((1, _LANE), jnp.float32).at[:, :_HIDDEN].set(
        jnp.asarray(b1, jnp.float32))
    w2_t = jnp.zeros((_LANE, out_size), param_dtype).at[:_HIDDEN, :].set(
        jnp.asarray(w2, param_dtype).T)
    b2_r = jnp.asarray(b2, jnp.float32).reshape(1, out_size)
    return (w1_t, b1_r, w2_t, b2_r), out_size


def _choose_batch_tile(batch, batch_tile):
    """Pick a batch tile that (a) divides B so no pad/slice pass is needed,
    (b) is a multiple of 8 (sublane alignment) unless it equals B, and
    (c) when B is large enough, yields >= 2 grid steps (v7x megacore)."""
    cap = min(batch_tile, batch)
    if batch >= 16:
        cap = min(cap, batch // 2)      # ensure >=2 grid steps when possible
    cap = max(cap, 1)
    for tb in range(cap, 0, -1):
        if batch % tb == 0 and (tb % 8 == 0 or tb == batch):
            return tb, batch            # exact tiling, no padding needed
    # Ragged batch with no good divisor: pad to an 8-aligned tile (rare path).
    tb = max(8, (cap // 8) * 8)
    return tb, tb * pl.cdiv(batch, tb)


def neural_network_forward(x, params, out_size, *, batch_tile=2048):
    """x: (B, in).  params from prepare_params().  Returns (B, out_size) f32."""
    w1_t, b1_r, w2_t, b2_r = params
    batch, in_size = x.shape

    tb, b_padded = _choose_batch_tile(batch, batch_tile)
    if b_padded != batch:               # only for ragged batch sizes
        x = jnp.pad(x, ((0, b_padded - batch), (0, 0)))
    if x.dtype != w1_t.dtype:           # no-op when the caller supplies the right dtype
        x = x.astype(w1_t.dtype)

    out = pl.pallas_call(
        _mlp_kernel,
        out_shape=jax.ShapeDtypeStruct((b_padded, out_size), jnp.float32),
        grid=(b_padded // tb,),
        in_specs=[
            pl.BlockSpec((tb, in_size), lambda i: (i, 0)),      # x tile (double-buffered)
            pl.BlockSpec(w1_t.shape, lambda i: (0, 0)),         # VMEM-resident W1
            pl.BlockSpec(b1_r.shape, lambda i: (0, 0)),         # VMEM-resident b1
            pl.BlockSpec(w2_t.shape, lambda i: (0, 0)),         # VMEM-resident W2
            pl.BlockSpec(b2_r.shape, lambda i: (0, 0)),         # VMEM-resident b2
        ],
        out_specs=pl.BlockSpec((tb, out_size), lambda i: (i, 0)),  # narrow output block
        compiler_params=pltpu.CompilerParams(
            dimension_semantics=("parallel",)),                  # v7x: shard batch over 2 TCs
    )(x, w1_t, b1_r, w2_t, b2_r)

    return out if b_padded == batch else out[:batch]


def _init_params(key, input_size, hidden, output_size):
    # Deterministic PyTorch-style uniform(-1/sqrt(fan_in), 1/sqrt(fan_in)) init.
    k1, k2, k3, k4 = jax.random.split(key, 4)
    bound1 = 1.0 / jnp.sqrt(jnp.float32(input_size))
    bound2 = 1.0 / jnp.sqrt(jnp.float32(hidden))
    w1 = jax.random.uniform(k1, (hidden, input_size), jnp.float32, -bound1, bound1)
    b1 = jax.random.uniform(k2, (hidden,), jnp.float32, -bound1, bound1)
    w2 = jax.random.uniform(k3, (output_size, hidden), jnp.float32, -bound2, bound2)
    b2 = jax.random.uniform(k4, (output_size,), jnp.float32, -bound2, bound2)
    return w1, b1, w2, b2


if __name__ == "__main__":
    key = jax.random.PRNGKey(0)
    kx, kp = jax.random.split(key)

    batch, input_size, hidden, output_size = 8, 16, 32, 4
    x = jax.random.normal(kx, (batch, input_size), jnp.float32)
    w1, b1, w2, b2 = _init_params(kp, input_size, hidden, output_size)

    params, out_size = prepare_params(w1, b1, w2, b2)   # one-time layout prep
    out = neural_network_forward(x, params, out_size)
    out = jax.block_until_ready(out)

    # Reference check in plain JAX (same math as the PyTorch forward).
    h_ref = jnp.maximum(x @ w1.T + b1, 0.0)
    ref = jax.nn.sigmoid(h_ref @ w2.T + b2) - 0.4
    assert out.shape == (batch, output_size)
    assert jnp.allclose(out, ref, atol=1e-5, rtol=1e-5), float(
        jnp.max(jnp.abs(out - ref)))

    print("KERNEL_OK")
</pallas_src>

<mosaic_0001>
module attributes {stable_mosaic.version = 11 : i64} {
  func.func @_mlp_kernel(%arg0: i32, %arg1: memref<8x16xf32, #tpu.memory_space<vmem>>, %arg2: memref<16x128xf32, #tpu.memory_space<vmem>>, %arg3: memref<1x128xf32, #tpu.memory_space<vmem>>, %arg4: memref<128x4xf32, #tpu.memory_space<vmem>>, %arg5: memref<1x4xf32, #tpu.memory_space<vmem>>, %arg6: memref<8x4xf32, #tpu.memory_space<vmem>>) attributes {dimension_semantics = [#tpu.dimension_semantics<parallel>], iteration_bounds = array<i64: 1>, scalar_prefetch = 0 : i64, scratch_operands = 0 : i64, tpu.core_type = #tpu.core_type<tc>, window_params = [{transform_indices = @transform_0, window_bounds = array<i64: 8, 16>}, {pipeline_mode = #tpu.pipeline_mode<synchronous>, transform_indices = @transform_1, window_bounds = array<i64: 16, 128>}, {pipeline_mode = #tpu.pipeline_mode<synchronous>, transform_indices = @transform_2, window_bounds = array<i64: 1, 128>}, {pipeline_mode = #tpu.pipeline_mode<synchronous>, transform_indices = @transform_3, window_bounds = array<i64: 128, 4>}, {pipeline_mode = #tpu.pipeline_mode<synchronous>, transform_indices = @transform_4, window_bounds = array<i64: 1, 4>}, {transform_indices = @transform_5, window_bounds = array<i64: 8, 4>}]} {
    %c0 = arith.constant 0 : index
    %c0_0 = arith.constant 0 : index
    %0 = vector.load %arg1[%c0, %c0_0] : memref<8x16xf32, #tpu.memory_space<vmem>>, vector<8x16xf32>
    %c0_1 = arith.constant 0 : index
    %c0_2 = arith.constant 0 : index
    %1 = vector.load %arg2[%c0_1, %c0_2] : memref<16x128xf32, #tpu.memory_space<vmem>>, vector<16x128xf32>
    %cst = arith.constant dense<0.000000e+00> : vector<8x128xf32>
    %2 = tpu.matmul %0, %1, %cst {dimension_numbers = #tpu.dot_dimension_numbers<[1], [0], [0], [1], [0, 0, 1, 1], [], []>} : vector<8x16xf32>, vector<16x128xf32>, vector<8x128xf32> -> vector<8x128xf32>
    %c0_3 = arith.constant 0 : index
    %c0_4 = arith.constant 0 : index
    %3 = vector.load %arg3[%c0_3, %c0_4] : memref<1x128xf32, #tpu.memory_space<vmem>>, vector<1x128xf32>
    %4 = vector.broadcast %3 : vector<1x128xf32> to vector<8x128xf32>
    %5 = arith.addf %2, %4 : vector<8x128xf32>
    %cst_5 = arith.constant 0.000000e+00 : f32
    %6 = vector.broadcast %cst_5 : f32 to vector<8x128xf32>
    %7 = arith.maximumf %5, %6 : vector<8x128xf32>
    %c0_6 = arith.constant 0 : index
    %c0_7 = arith.constant 0 : index
    %8 = vector.load %arg4[%c0_6, %c0_7] : memref<128x4xf32, #tpu.memory_space<vmem>>, vector<128x4xf32>
    %cst_8 = arith.constant dense<0.000000e+00> : vector<8x4xf32>
    %9 = tpu.matmul %7, %8, %cst_8 {dimension_numbers = #tpu.dot_dimension_numbers<[1], [0], [0], [1], [0, 0, 1, 1], [], []>} : vector<8x128xf32>, vector<128x4xf32>, vector<8x4xf32> -> vector<8x4xf32>
    %c0_9 = arith.constant 0 : index
    %c0_10 = arith.constant 0 : index
    %10 = vector.load %arg5[%c0_9, %c0_10] : memref<1x4xf32, #tpu.memory_space<vmem>>, vector<1x4xf32>
    %11 = vector.broadcast %10 : vector<1x4xf32> to vector<8x4xf32>
    %12 = arith.addf %9, %11 : vector<8x4xf32>
    %cst_11 = arith.constant 0.000000e+00 : f32
    %13 = vector.broadcast %cst_11 : f32 to vector<8x4xf32>
    %14 = arith.subf %13, %12 : vector<8x4xf32>
    %15 = math.exp %14 : vector<8x4xf32>
    %cst_12 = arith.constant 1.000000e+00 : f32
    %16 = vector.broadcast %cst_12 : f32 to vector<8x4xf32>
    %17 = arith.addf %16, %15 : vector<8x4xf32>
    %18 = tpu.reciprocal %17 : vector<8x4xf32> -> vector<8x4xf32>
    %cst_13 = arith.constant 4.000000e-01 : f32
    %19 = vector.broadcast %cst_13 : f32 to vector<8x4xf32>
    %20 = arith.subf %18, %19 : vector<8x4xf32>
    %c0_14 = arith.constant 0 : index
    %c0_15 = arith.constant 0 : index
    %21 = vector.load %arg6[%c0_14, %c0_15] : memref<8x4xf32, #tpu.memory_space<vmem>>, vector<8x4xf32>
    tpu.vector_store %arg6[%c0_14, %c0_15], %20 {strides = array<i32>} : memref<8x4xf32, #tpu.memory_space<vmem>>, vector<8x4xf32>,
    return
  }
  func.func @transform_0(%arg0: i32) -> (i32, i32) {
    %c0_i32 = arith.constant 0 : i32
    %c0_i32_0 = arith.constant 0 : i32
    return %arg0, %c0_i32 : i32, i32
  }
  func.func @transform_1(%arg0: i32) -> (i32, i32) {
    %c0_i32 = arith.constant 0 : i32
    %c0_i32_0 = arith.constant 0 : i32
    %c0_i32_1 = arith.constant 0 : i32
    return %c0_i32, %c0_i32_0 : i32, i32
  }
  func.func @transform_2(%arg0: i32) -> (i32, i32) {
    %c0_i32 = arith.constant 0 : i32
    %c0_i32_0 = arith.constant 0 : i32
    %c0_i32_1 = arith.constant 0 : i32
    return %c0_i32, %c0_i32_0 : i32, i32
  }
  func.func @transform_3(%arg0: i32) -> (i32, i32) {
    %c0_i32 = arith.constant 0 : i32
    %c0_i32_0 = arith.constant 0 : i32
    %c0_i32_1 = arith.constant 0 : i32
    return %c0_i32, %c0_i32_0 : i32, i32
  }
  func.func @transform_4(%arg0: i32) -> (i32, i32) {
    %c0_i32 = arith.constant 0 : i32
    %c0_i32_0 = arith.constant 0 : i32
    %c0_i32_1 = arith.constant 0 : i32
    return %c0_i32, %c0_i32_0 : i32, i32
  }
  func.func @transform_5(%arg0: i32) -> (i32, i32) {
    %c0_i32 = arith.constant 0 : i32
    %c0_i32_0 = arith.constant 0 : i32
    return %arg0, %c0_i32 : i32, i32
  }
}

</mosaic_0001>

<llo_original>
// kernel: tpu_custom_call.1
$region0: #{tpu_custom_call.1}
  #allocation0 [shape = 'u32[]', space=smem, size = 0x4, offset = 0x4, fixed_abs, tag = 'smem constant byte address 0x4 - core index']
  #allocation1 [shape = 'u32[144,128]{1,0:T(1,128)}', space=vmem, size = 0x12000, scoped, tag = 'internal scratch']
  %s0 = inlined_call_operand.vmem [shape: f32[8,16], index: 0, kind: input, shape index: {}]
  %s1 = inlined_call_operand.vmem [shape: f32[16,128], index: 1, kind: input, shape index: {}]
  %s2 = inlined_call_operand.vmem [shape: f32[1,128], index: 2, kind: input, shape index: {}]
  %s3 = inlined_call_operand.vmem [shape: f32[128,4], index: 3, kind: input, shape index: {}]
  %s4 = inlined_call_operand.vmem [shape: f32[1,4], index: 4, kind: input, shape index: {}]
  %s5 = inlined_call_operand.vmem [shape: f32[8,4], index: 5, kind: output, shape index: {}]
  %s6 = sld [smem:[#allocation0]]
  $region30: #{tpu_custom_call.1} parent=0
    _
  %s8 = ssub.s32 1, %s6
  %s9 = scalar_select 0, %s8, %s6
  // Predicated region
  $region2: #{tpu_custom_call.1} parent=0 // pred_check
    _
  $region3: #{tpu_custom_call.1} parent=0 // pred_check_branch
    %11 = sbr.rel (0) target = $region5
  $region4: #{tpu_custom_call.1} parent=0 // pred_region
    _
  $region5: #{tpu_custom_call.1} parent=0 // pred_fallthru
    _
  // Predicated region
  $region6: #{tpu_custom_call.1} parent=0 // pred_check
    _
  $region7: #{tpu_custom_call.1} parent=0 // pred_check_branch
    %13 = sbr.rel (0) target = $region9
  $region8: #{tpu_custom_call.1} parent=0 // pred_region
    _
  $region9: #{tpu_custom_call.1} parent=0 // pred_fallthru
    _
  // Predicated region
  $region10: #{tpu_custom_call.1} parent=0 // pred_check
    _
  $region11: #{tpu_custom_call.1} parent=0 // pred_check_branch
    %15 = sbr.rel (0) target = $region13
  $region12: #{tpu_custom_call.1} parent=0 // pred_region
    _
  $region13: #{tpu_custom_call.1} parent=0 // pred_fallthru
    _
  // Predicated region
  $region14: #{tpu_custom_call.1} parent=0 // pred_check
    _
  $region15: #{tpu_custom_call.1} parent=0 // pred_check_branch
    %17 = sbr.rel (0) target = $region17
  $region16: #{tpu_custom_call.1} parent=0 // pred_region
    _
  $region17: #{tpu_custom_call.1} parent=0 // pred_fallthru
    _
  // Predicated region
  $region18: #{tpu_custom_call.1} parent=0 // pred_check
    _
  $region19: #{tpu_custom_call.1} parent=0 // pred_check_branch
    %19 = sbr.rel (0) target = $region21
  $region20: #{tpu_custom_call.1} parent=0 // pred_region
    _
  $region21: #{tpu_custom_call.1} parent=0 // pred_fallthru
    _
  %v20 = vld [vmem:[%s0] sm:$0xff]
  %v21 = vld [vmem:[%s1] sm:$0xff]
  %v22 = vld [vmem:[%s1 + $0x8] sm:$0xff]
  %v23 = vld [vmem:[%s2] sm:$0x1]
  %v25 = vlaneseq
  %v26 = vshrl.u32 %v25, 7
  %v27 = vsub.s32 0, %v26
  %v28 = vrot.slane %v23, %v27
  %vm30 = vcmask 130048
  %v32 = vsel %vm30, %v20, 0
  %34 = vmatprep.subr.mxu0 0.0
  %35 = vmatpush1.msra.mxu0 %v21
  %36 = vmatprep.subr.mxu0 0.0
  %37 = vmatpush1.msra.mxu0 %v22
  %38 = vmatprep.subr.mxu0 0.0
  %39 = vmatpush1.msra.mxu0 0.0
  %40 = vmatprep.subr.mxu0 0.0
  %41 = vmatpush1.msra.mxu0 0.0
  %42 = vmatprep.subr.mxu0 0.0
  %43 = vmatpush1.msra.mxu0 0.0
  %44 = vmatprep.subr.mxu0 0.0
  %45 = vmatpush1.msra.mxu0 0.0
  %46 = vmatprep.subr.mxu0 0.0
  %47 = vmatpush1.msra.mxu0 0.0
  %48 = vmatprep.subr.mxu0 0.0
  %49 = vmatpush1.msra.mxu0 0.0
  %50 = vmatprep.subr.mxu0 0.0
  %51 = vmatpush1.msra.mxu0 0.0
  %52 = vmatprep.subr.mxu0 0.0
  %53 = vmatpush1.msra.mxu0 0.0
  %54 = vmatprep.subr.mxu0 0.0
  %55 = vmatpush1.msra.mxu0 0.0
  %56 = vmatprep.subr.mxu0 0.0
  %57 = vmatpush1.msra.mxu0 0.0
  %58 = vmatprep.subr.mxu0 0.0
  %59 = vmatpush1.msra.mxu0 0.0
  %60 = vmatprep.subr.mxu0 0.0
  %61 = vmatpush1.msra.mxu0 0.0
  %62 = vmatprep.subr.mxu0 0.0
  %63 = vmatpush1.msra.mxu0 0.0
  %64 = vmatprep.subr.mxu0 0.0
  %65 = vmatpush1.msra.mxu0 0.0
  %66 = vmatprep.subr.mxu0 0.0
  %67 = vmatpush1.msra.mxu0 0.0
  %68 = vmatprep.subr.mxu0 0.0
  %69 = vmatpush1.msra.mxu0 0.0
  %70 = vmatprep.subr.mxu0 0.0
  %71 = vmatpush1.msra.mxu0 0.0
  %72 = vmatprep.subr.mxu0 0.0
  %73 = vmatpush1.msra.mxu0 0.0
  %74 = vmatprep.subr.mxu0 0.0
  %75 = vmatpush1.msra.mxu0 0.0
  %76 = vmatprep.subr.mxu0 0.0
  %77 = vmatpush1.msra.mxu0 0.0
  %78 = vmatprep.subr.mxu0 0.0
  %79 = vmatpush1.msra.mxu0 0.0
  %80 = vmatprep.subr.mxu0 0.0
  %81 = vmatpush1.msra.mxu0 0.0
  %82 = vmatprep.subr.mxu0 0.0
  %83 = vmatpush1.msra.mxu0 0.0
  %84 = vmatprep.subr.mxu0 0.0
  %85 = vmatpush1.msra.mxu0 0.0
  %86 = vmatprep.subr.mxu0 0.0
  %87 = vmatpush1.msra.mxu0 0.0
  %88 = vmatprep.subr.mxu0 0.0
  %89 = vmatpush1.msra.mxu0 0.0
  %90 = vmatprep.subr.mxu0 0.0
  %91 = vmatpush1.msra.mxu0 0.0
  %92 = vmatprep.subr.mxu0 0.0
  %93 = vmatpush1.msra.mxu0 0.0
  %94 = vmatprep.subr.mxu0 0.0
  %95 = vmatpush1.msra.mxu0 0.0
  %96 = vmatprep.subr.mxu0 0.0
  %97 = vmatpush1.msra.mxu0 0.0
  %98 = vmatprep.mubr.f32.mxu0 0.0
  %99 = vmatmul.mubr.f32.gmra.mrb[0].mxu0 %v32
  %v100 = vpop.f32.mrb[0].mxu0
  %v101 = vadd.f32 %v28, %v100
  %v102 = vpop.f32.mrb[0].mxu0
  %103 = vdwg.mxu0
  %v104 = vmax.f32 %v101, 0.0
  %v105 = vld [vmem:[%s3] sm:$0xff]
  %v106 = vld [vmem:[%s3 + $0x8] sm:$0xff]
  %v107 = vld [vmem:[%s3 + $0x10] sm:$0xff]
  %v108 = vld [vmem:[%s3 + $0x18] sm:$0xff]
  %v109 = vld [vmem:[%s3 + $0x20] sm:$0xff]
  %v110 = vld [vmem:[%s3 + $0x28] sm:$0xff]
  %v111 = vld [vmem:[%s3 + $0x30] sm:$0xff]
  %v112 = vld [vmem:[%s3 + $0x38] sm:$0xff]
  %v113 = vld [vmem:[%s3 + $0x40] sm:$0xff]
  %v114 = vld [vmem:[%s3 + $0x48] sm:$0xff]
  %v115 = vld [vmem:[%s3 + $0x50] sm:$0xff]
  %v116 = vld [vmem:[%s3 + $0x58] sm:$0xff]
  %v117 = vld [vmem:[%s3 + $0x60] sm:$0xff]
  %v118 = vld [vmem:[%s3 + $0x68] sm:$0xff]
  %v119 = vld [vmem:[%s3 + $0x70] sm:$0xff]
  %v120 = vld [vmem:[%s3 + $0x78] sm:$0xff]
  %v121 = vld [vmem:[%s4] sm:$0x1]
  %v123 = vlaneseq
  %v124 = vshrl.u32 %v123, 7
  %v125 = vsub.s32 0, %v124
  %v126 = vrot.slane %v121, %v125
  %128 = vmatprep.subr.mxu0 0.0
  %129 = vmatpush1.msra.mxu0 %v105
  %130 = vmatprep.subr.mxu0 0.0
  %131 = vmatpush1.msra.mxu0 %v106
  %132 = vmatprep.subr.mxu0 0.0
  %133 = vmatpush1.msra.mxu0 %v107
  %134 = vmatprep.subr.mxu0 0.0
  %135 = vmatpush1.msra.mxu0 %v108
  %136 = vmatprep.subr.mxu0 0.0
  %137 = vmatpush1.msra.mxu0 %v109
  %138 = vmatprep.subr.mxu0 0.0
  %139 = vmatpush1.msra.mxu0 %v110
  %140 = vmatprep.subr.mxu0 0.0
  %141 = vmatpush1.msra.mxu0 %v111
  %142 = vmatprep.subr.mxu0 0.0
  %143 = vmatpush1.msra.mxu0 %v112
  %144 = vmatprep.subr.mxu0 0.0
  %145 = vmatpush1.msra.mxu0 %v113
  %146 = vmatprep.subr.mxu0 0.0
  %147 = vmatpush1.msra.mxu0 %v114
  %148 = vmatprep.subr.mxu0 0.0
  %149 = vmatpush1.msra.mxu0 %v115
  %150 = vmatprep.subr.mxu0 0.0
  %151 = vmatpush1.msra.mxu0 %v116
  %152 = vmatprep.subr.mxu0 0.0
  %153 = vmatpush1.msra.mxu0 %v117
  %154 = vmatprep.subr.mxu0 0.0
  %155 = vmatpush1.msra.mxu0 %v118
  %156 = vmatprep.subr.mxu0 0.0
  %157 = vmatpush1.msra.mxu0 %v119
  %158 = vmatprep.subr.mxu0 0.0
  %159 = vmatpush1.msra.mxu0 %v120
  %160 = vmatprep.subr.mxu0 0.0
  %161 = vmatpush1.msra.mxu0 0.0
  %162 = vmatprep.subr.mxu0 0.0
  %163 = vmatpush1.msra.mxu0 0.0
  %164 = vmatprep.subr.mxu0 0.0
  %165 = vmatpush1.msra.mxu0 0.0
  %166 = vmatprep.subr.mxu0 0.0
  %167 = vmatpush1.msra.mxu0 0.0
  %168 = vmatprep.subr.mxu0 0.0
  %169 = vmatpush1.msra.mxu0 0.0
  %170 = vmatprep.subr.mxu0 0.0
  %171 = vmatpush1.msra.mxu0 0.0
  %172 = vmatprep.subr.mxu0 0.0
  %173 = vmatpush1.msra.mxu0 0.0
  %174 = vmatprep.subr.mxu0 0.0
  %175 = vmatpush1.msra.mxu0 0.0
  %176 = vmatprep.subr.mxu0 0.0
  %177 = vmatpush1.msra.mxu0 0.0
  %178 = vmatprep.subr.mxu0 0.0
  %179 = vmatpush1.msra.mxu0 0.0
  %180 = vmatprep.subr.mxu0 0.0
  %181 = vmatpush1.msra.mxu0 0.0
  %182 = vmatprep.subr.mxu0 0.0
  %183 = vmatpush1.msra.mxu0 0.0
  %184 = vmatprep.subr.mxu0 0.0
  %185 = vmatpush1.msra.mxu0 0.0
  %186 = vmatprep.subr.mxu0 0.0
  %187 = vmatpush1.msra.mxu0 0.0
  %188 = vmatprep.subr.mxu0 0.0
  %189 = vmatpush1.msra.mxu0 0.0
  %190 = vmatprep.subr.mxu0 0.0
  %191 = vmatpush1.msra.mxu0 0.0
  %192 = vmatprep.mubr.f32.mxu0 0.0
  %193 = vmatmul.mubr.f32.gmra.mrb[0].mxu0 %v104
  %v194 = vpop.f32.mrb[0].mxu0
  %v195 = vadd.f32 %v126, %v194
  %v196 = vpop.f32.mrb[0].mxu0
  %197 = vdwg.mxu0
  %v198 = vsub.f32 0.0, %v195
  %v199 = vmul.f32 %v198, 1.442695
  %v200 = vpow.pop %v199
  %v201 = vadd.f32 %v200, 1.0
  %v202 = vrcp.pop %v201
  %v203 = vsub.f32 %v202, 0.4
  %vm204 = vcmask 31744
  %205 = vst.msk [vmem:[%s5] sm:$0xff] %vm204, %v203
  // Predicated region
  $region22: #{tpu_custom_call.1} parent=0 // pred_check
    _
  $region23: #{tpu_custom_call.1} parent=0 // pred_check_branch
    %207 = sbr.rel (0) target = $region25
  $region24: #{tpu_custom_call.1} parent=0 // pred_region
    _
  $region25: #{tpu_custom_call.1} parent=0 // pred_fallthru
    _
  // Predicated region
  $region26: #{tpu_custom_call.1} parent=0 // pred_check
    _
  $region27: #{tpu_custom_call.1} parent=0 // pred_check_branch
    %209 = sbr.rel (0) target = $region29
  $region28: #{tpu_custom_call.1} parent=0 // pred_region
    _
  $region29: #{tpu_custom_call.1} parent=0 // pred_fallthru
    _

</llo_original>
